<compile_context>
chip_gen: v6e
topology: v6e:2x2x1
jax: 0.10.0
libtpu: 0.0.40
codegen_flags: <defaults>
</compile_context>

<pallas_src>
import functools

import jax
import jax.numpy as jnp
from jax.experimental import pallas as pl
from jax.experimental.pallas import tpu as pltpu


# -----------------------------------------------------------------------------
# Pallas kernel:  out[b, o, f] = sum_i a[b, i, f] * w[i, o, f]     (complex, per-f)
# -----------------------------------------------------------------------------
def _specmul_kernel(cin, lane_chunk, a_ref, w_ref, o_ref):
    # a_ref: (2, Cin, B,     tF)   bf16/f32   (re/im, in-chan, batch, fused-freq)
    # w_ref: (2, Cin, tCout, tF)   bf16/f32
    # o_ref: (2, B,   tCout, tF)   bf16/f32   (written exactly once per lane chunk)
    tf = a_ref.shape[-1]
    for c0 in range(0, tf, lane_chunk):          # static lane chunking
        cl = min(lane_chunk, tf - c0)
        sl = slice(c0, c0 + cl)
        re_acc = None
        im_acc = None
        for i in range(cin):                     # unrolled: Cin is static
            ar = a_ref[0, i, :, sl].astype(jnp.float32)[:, None, :]   # (B,1,cl)
            ai = a_ref[1, i, :, sl].astype(jnp.float32)[:, None, :]
            wr = w_ref[0, i, :, sl].astype(jnp.float32)[None, :, :]   # (1,Co,cl)
            wi = w_ref[1, i, :, sl].astype(jnp.float32)[None, :, :]
            re_i = ar * wr - ai * wi
            im_i = ai * wr + ar * wi
            if re_acc is None:
                re_acc, im_acc = re_i, im_i
            else:
                re_acc = re_acc + re_i
                im_acc = im_acc + im_i
        o_ref[0, :, :, sl] = re_acc.astype(o_ref.dtype)
        o_ref[1, :, :, sl] = im_acc.astype(o_ref.dtype)


# -----------------------------------------------------------------------------
# Tiling / wrapper around pallas_call
# -----------------------------------------------------------------------------
def _round_up(n, m):
    return ((n + m - 1) // m) * m


def _vmem_capacity_bytes():
    try:
        info = pltpu.get_tpu_info()
        cap = int(getattr(info, "vmem_capacity_bytes", 0))
        if cap > 0:
            return cap
    except Exception:
        pass
    return 64 << 20      # conservative fallback (v7x-sized)


def _choose_tiles(f_p, b, cin, cout_p, in_bytes, out_bytes, budget):
    """Pick (tf, tcout): lane tile (128-multiple dividing f_p) and Cout tile
    (8-multiple dividing cout_p) whose double-buffered working set fits budget."""

    def ws(tf, tc):
        a_b = 2 * cin * b * tf * in_bytes
        w_b = 2 * cin * tc * tf * in_bytes
        o_b = 2 * b * tc * tf * out_bytes
        return 2 * (a_b + w_b + o_b)             # double-buffered

    f_units = f_p // 128
    f_divs = sorted(128 * k for k in range(1, f_units + 1) if f_units % k == 0)
    c_units = cout_p // 8
    c_divs = sorted(8 * k for k in range(1, c_units + 1) if c_units % k == 0)

    tf_floor = 512 if f_p >= 2048 else 128       # keep DMA rows wide at scale

    # Pass 1: full Cout; largest fitting lane tile >= floor, but prefer >= 4
    # grid steps so v7x can shard across its 2 TCs and overlap DMA/compute.
    fit = [t for t in f_divs if ws(t, cout_p) <= budget]
    if fit and fit[-1] >= tf_floor:
        four_step = [t for t in fit if t >= tf_floor and f_p // t >= 4]
        return (four_step[-1] if four_step else fit[-1]), cout_p

    # Pass 2: keep the lane tile wide, tile Cout with an extra grid axis instead.
    tf = next((t for t in f_divs if t >= tf_floor), f_divs[-1])
    fit_c = [c for c in c_divs if ws(tf, c) <= budget]
    if fit_c:
        return tf, fit_c[-1]

    # Pass 3: minimal tiles; refuse to emit something that cannot fit VMEM.
    tf, tc = f_divs[0], c_divs[0]
    if ws(tf, tc) > budget:
        raise ValueError(
            f"spectral-conv working set {ws(tf, tc)} B exceeds VMEM budget "
            f"{budget} B even at minimal tiles (tf=128, tcout=8)")
    return tf, tc


def compl_mul3d_pallas(a, w, out_dtype=jnp.bfloat16):
    """a: (2, Cin, B, Fp), w: (2, Cin, Cout_p, Fp) -> (2, B, Cout_p, Fp) out_dtype.

    Fp must be a multiple of 128, Cout_p a multiple of 8.  Per-frequency complex
    channel contraction (pure VPU work -- the weight varies per frequency, so
    the MXU does not apply).  f32 accumulation inside the kernel."""
    _, cin, b, f_p = a.shape
    cout_p = w.shape[2]
    in_bytes = a.dtype.itemsize
    out_bytes = jnp.dtype(out_dtype).itemsize

    phys = _vmem_capacity_bytes()
    budget = int(0.70 * phys)                    # ~45 MiB v7x, ~90 MiB v5e/v6e
    tf, tcout = _choose_tiles(f_p, b, cin, cout_p, in_bytes, out_bytes, budget)
    n_f = f_p // tf
    n_c = cout_p // tcout

    # Keep the live f32 accumulator (re+im) within ~24 vregs by chunking lanes.
    acc_bytes_per_lane = 2 * b * tcout * 4
    max_lanes = max(128, ((96 << 10) // max(acc_bytes_per_lane, 1)) // 128 * 128)
    lane_chunk = min(tf, max_lanes)

    a_block = 2 * cin * b * tf * in_bytes
    w_block = 2 * cin * tcout * tf * in_bytes
    o_block = 2 * b * tcout * tf * out_bytes
    working_set = 2 * (a_block + w_block + o_block)
    vmem_limit = int(min(int(0.85 * phys), max(working_set + (4 << 20), 32 << 20)))

    cost = pl.CostEstimate(
        flops=int(8 * cin * b * cout_p * f_p),
        transcendentals=0,
        bytes_accessed=int(a.size * in_bytes + w.size * in_bytes
                           + 2 * b * cout_p * f_p * out_bytes),
    )

    return pl.pallas_call(
        functools.partial(_specmul_kernel, cin, lane_chunk),
        out_shape=jax.ShapeDtypeStruct((2, b, cout_p, f_p), out_dtype),
        grid=(n_c, n_f),
        in_specs=[
            pl.BlockSpec((2, cin, b, tf), lambda ci, fi: (0, 0, 0, fi)),
            pl.BlockSpec((2, cin, tcout, tf), lambda ci, fi: (0, 0, ci, fi)),
        ],
        out_specs=pl.BlockSpec((2, b, tcout, tf), lambda ci, fi: (0, 0, ci, fi)),
        compiler_params=pltpu.CompilerParams(
            dimension_semantics=("parallel", "parallel"),
            vmem_limit_bytes=vmem_limit,
        ),
        cost_estimate=cost,
    )(a, w)


# -----------------------------------------------------------------------------
# Hoisted weight repack (call once at parameter init, not per forward)
# -----------------------------------------------------------------------------
def pack_spectral_weights(w1, w2, w3, w4, transport_dtype=jnp.bfloat16):
    """(Cin, Cout, m1, m2, m3, 2) x4 -> (2, Cin, Cout_p, Fp) transport_dtype,
    with the 4 corners fused (corner-major) into the frequency axis and padded
    to Cout_p = ceil8(Cout), Fp = ceil128(4*m1*m2*m3)."""
    cin, cout, m1, m2, m3, _ = w1.shape
    f = m1 * m2 * m3
    parts = [jnp.moveaxis(w, -1, 0).reshape(2, cin, cout, f)
             for w in (w1, w2, w3, w4)]
    w = jnp.concatenate(parts, axis=-1)                 # (2, Cin, Cout, 4F)
    cout_p = _round_up(cout, 8)
    f_p = _round_up(4 * f, 128)
    w = jnp.pad(w, ((0, 0), (0, 0), (0, cout_p - cout), (0, f_p - 4 * f)))
    return w.astype(transport_dtype)


# -----------------------------------------------------------------------------
# Full forward pass (matches torch SpectralConv3d_fast.forward)
# -----------------------------------------------------------------------------
def spectral_conv3d_fast(x, packed_w, out_channels, modes1, modes2, modes3,
                         transport_dtype=jnp.bfloat16):
    """x: (B, Cin, S1, S2, S3) f32; packed_w from pack_spectral_weights()."""
    b, cin, s1, s2, s3 = x.shape
    m1, m2, m3 = modes1, modes2, modes3
    cout = out_channels
    s3h = s3 // 2 + 1
    f = m1 * m2 * m3
    f_fused = 4 * f
    f_p = packed_w.shape[-1]

    # torch.rfft(x, 3, normalized=True, onesided=True)  ->  rfftn norm="ortho"
    x_ft = jnp.fft.rfftn(x, axes=(-3, -2, -1), norm="ortho")  # (B,Cin,S1,S2,S3h)

    # ---- gather the 4 low-frequency corners, fuse into the lane axis ----
    corners = (
        x_ft[:, :, :m1, :m2, :m3],
        x_ft[:, :, -m1:, :m2, :m3],
        x_ft[:, :, :m1, -m2:, :m3],
        x_ft[:, :, -m1:, -m2:, :m3],
    )
    a = jnp.concatenate(
        [jnp.stack((c.real, c.imag), axis=0).reshape(2, b, cin, f) for c in corners],
        axis=-1)                                           # (2, B, Cin, 4F)
    a = a.transpose(0, 2, 1, 3)                            # (2, Cin, B, 4F)
    if f_p != f_fused:
        a = jnp.pad(a, ((0, 0), (0, 0), (0, 0), (0, f_p - f_fused)))
    # bf16 transport over HBM (mem-bound kernel); compute/accumulate stays f32.
    a = a.astype(transport_dtype)

    o = compl_mul3d_pallas(a, packed_w, out_dtype=transport_dtype)  # (2,B,Cop,Fp)
    o = o[:, :, :cout, :f_fused].astype(jnp.float32)       # drop padding
    oc = (o[0] + 1j * o[1]).astype(jnp.complex64)          # (B, Cout, 4F)
    oc = oc.reshape(b, cout, 4, m1, m2, m3)
    o0, o1, o2, o3 = oc[:, :, 0], oc[:, :, 1], oc[:, :, 2], oc[:, :, 3]

    # ---- scatter the 4 corners into the full spectrum ----
    # NOTE: the original torch code allocates out_ft with in_channels; that is
    # only valid when Cin == Cout — we allocate with Cout.
    cdt = jnp.complex64
    if 2 * m1 <= s1 and 2 * m2 <= s2 and m3 <= s3h:
        gap2 = jnp.zeros((b, cout, m1, s2 - 2 * m2, m3), cdt)
        top = jnp.concatenate([o0, gap2, o2], axis=3)      # rows  :m1
        bot = jnp.concatenate([o1, gap2, o3], axis=3)      # rows -m1:
        gap1 = jnp.zeros((b, cout, s1 - 2 * m1, s2, m3), cdt)
        low = jnp.concatenate([top, gap1, bot], axis=2)    # (B,Cout,S1,S2,m3)
        gap3 = jnp.zeros((b, cout, s1, s2, s3h - m3), cdt)
        out_ft = jnp.concatenate([low, gap3], axis=4)
    else:  # overlapping corner windows: preserve torch's sequential write order
        out_ft = jnp.zeros((b, cout, s1, s2, s3h), cdt)
        out_ft = out_ft.at[:, :, :m1, :m2, :m3].set(o0)
        out_ft = out_ft.at[:, :, -m1:, :m2, :m3].set(o1)
        out_ft = out_ft.at[:, :, :m1, -m2:, :m3].set(o2)
        out_ft = out_ft.at[:, :, -m1:, -m2:, :m3].set(o3)

    # torch.irfft(..., normalized=True, onesided=True, signal_sizes=...) -> ortho
    return jnp.fft.irfftn(out_ft, s=(s1, s2, s3), axes=(-3, -2, -1), norm="ortho")


def spectral_conv3d_fast_raw(x, w1, w2, w3, w4, modes1, modes2, modes3,
                             transport_dtype=jnp.bfloat16):
    """Convenience wrapper matching the torch module signature (re-packs weights
    every call — prefer pack_spectral_weights() + spectral_conv3d_fast)."""
    packed = pack_spectral_weights(w1, w2, w3, w4, transport_dtype)
    return spectral_conv3d_fast(x, packed, w1.shape[1], modes1, modes2, modes3,
                                transport_dtype)


# -----------------------------------------------------------------------------
# Pure-JAX reference (f32 complex einsum) for a loose correctness check
# -----------------------------------------------------------------------------
def _reference(x, w1, w2, w3, w4, m1, m2, m3):
    b, _, s1, s2, s3 = x.shape
    cout = w1.shape[1]
    x_ft = jnp.fft.rfftn(x, axes=(-3, -2, -1), norm="ortho")

    def mul(ac, wt):
        wc = wt[..., 0] + 1j * wt[..., 1]
        return jnp.einsum("bixyz,ioxyz->boxyz", ac, wc)

    out_ft = jnp.zeros((b, cout, s1, s2, s3 // 2 + 1), jnp.complex64)
    out_ft = out_ft.at[:, :, :m1, :m2, :m3].set(mul(x_ft[:, :, :m1, :m2, :m3], w1))
    out_ft = out_ft.at[:, :, -m1:, :m2, :m3].set(mul(x_ft[:, :, -m1:, :m2, :m3], w2))
    out_ft = out_ft.at[:, :, :m1, -m2:, :m3].set(mul(x_ft[:, :, :m1, -m2:, :m3], w3))
    out_ft = out_ft.at[:, :, -m1:, -m2:, :m3].set(mul(x_ft[:, :, -m1:, -m2:, :m3], w4))
    return jnp.fft.irfftn(out_ft, s=(s1, s2, s3), axes=(-3, -2, -1), norm="ortho")


if __name__ == "__main__":
    B, Cin, Cout = 2, 4, 4
    S1 = S2 = S3 = 16
    m1 = m2 = m3 = 4

    key = jax.random.PRNGKey(0)
    kx, k1, k2, k3, k4 = jax.random.split(key, 5)

    x = jax.random.normal(kx, (B, Cin, S1, S2, S3), dtype=jnp.float32)

    scale = 1.0 / (Cin * Cout)
    wshape = (Cin, Cout, m1, m2, m3, 2)
    w1 = scale * jax.random.uniform(k1, wshape, dtype=jnp.float32)
    w2 = scale * jax.random.uniform(k2, wshape, dtype=jnp.float32)
    w3 = scale * jax.random.uniform(k3, wshape, dtype=jnp.float32)
    w4 = scale * jax.random.uniform(k4, wshape, dtype=jnp.float32)

    # Hoisted, once-per-module weight repack (corner-fused, padded, bf16).
    packed_w = jax.block_until_ready(pack_spectral_weights(w1, w2, w3, w4))

    fwd = jax.jit(functools.partial(spectral_conv3d_fast, out_channels=Cout,
                                    modes1=m1, modes2=m2, modes3=m3))
    y = jax.block_until_ready(fwd(x, packed_w))

    assert y.shape == (B, Cout, S1, S2, S3), y.shape
    assert jnp.isfinite(y).all()

    # Loose tolerance: operands/output travel in bf16, accumulation is f32.
    y_ref = _reference(x, w1, w2, w3, w4, m1, m2, m3)
    assert jnp.allclose(y, y_ref, rtol=5e-2, atol=5e-3), float(jnp.abs(y - y_ref).max())

    print("KERNEL_OK")
</pallas_src>

<mosaic_0001>
module attributes {stable_mosaic.version = 11 : i64} {
  func.func @_specmul_kernel(%arg0: i32, %arg1: i32, %arg2: memref<2x4x2x256xbf16, #tpu.memory_space<vmem>>, %arg3: memref<2x4x8x256xbf16, #tpu.memory_space<vmem>>, %arg4: memref<2x2x8x256xbf16, #tpu.memory_space<vmem>>) attributes {dimension_semantics = [#tpu.dimension_semantics<parallel>, #tpu.dimension_semantics<parallel>], iteration_bounds = array<i64: 1, 1>, scalar_prefetch = 0 : i64, scratch_operands = 0 : i64, tpu.core_type = #tpu.core_type<tc>, window_params = [{transform_indices = @transform_0, window_bounds = array<i64: 2, 4, 2, 256>}, {transform_indices = @transform_1, window_bounds = array<i64: 2, 4, 8, 256>}, {transform_indices = @transform_2, window_bounds = array<i64: 2, 2, 8, 256>}]} {
    %c0 = arith.constant 0 : index
    %c0_0 = arith.constant 0 : index
    %c0_1 = arith.constant 0 : index
    %c0_2 = arith.constant 0 : index
    %0 = vector.load %arg2[%c0, %c0_0, %c0_1, %c0_2] : memref<2x4x2x256xbf16, #tpu.memory_space<vmem>>, vector<1x1x2x256xbf16>
    %1 = vector.shape_cast %0 : vector<1x1x2x256xbf16> to vector<2x256xbf16>
    %2 = arith.extf %1 : vector<2x256xbf16> to vector<2x256xf32>
    %3 = vector.shape_cast %2 : vector<2x256xf32> to vector<2x1x256xf32>
    %c1 = arith.constant 1 : index
    %c0_3 = arith.constant 0 : index
    %c0_4 = arith.constant 0 : index
    %c0_5 = arith.constant 0 : index
    %4 = vector.load %arg2[%c1, %c0_3, %c0_4, %c0_5] : memref<2x4x2x256xbf16, #tpu.memory_space<vmem>>, vector<1x1x2x256xbf16>
    %5 = vector.shape_cast %4 : vector<1x1x2x256xbf16> to vector<2x256xbf16>
    %6 = arith.extf %5 : vector<2x256xbf16> to vector<2x256xf32>
    %7 = vector.shape_cast %6 : vector<2x256xf32> to vector<2x1x256xf32>
    %c0_6 = arith.constant 0 : index
    %c0_7 = arith.constant 0 : index
    %c0_8 = arith.constant 0 : index
    %c0_9 = arith.constant 0 : index
    %8 = vector.load %arg3[%c0_6, %c0_7, %c0_8, %c0_9] : memref<2x4x8x256xbf16, #tpu.memory_space<vmem>>, vector<1x1x8x256xbf16>
    %9 = vector.shape_cast %8 : vector<1x1x8x256xbf16> to vector<8x256xbf16>
    %10 = arith.extf %9 : vector<8x256xbf16> to vector<8x256xf32>
    %11 = vector.shape_cast %10 : vector<8x256xf32> to vector<1x8x256xf32>
    %c1_10 = arith.constant 1 : index
    %c0_11 = arith.constant 0 : index
    %c0_12 = arith.constant 0 : index
    %c0_13 = arith.constant 0 : index
    %12 = vector.load %arg3[%c1_10, %c0_11, %c0_12, %c0_13] : memref<2x4x8x256xbf16, #tpu.memory_space<vmem>>, vector<1x1x8x256xbf16>
    %13 = vector.shape_cast %12 : vector<1x1x8x256xbf16> to vector<8x256xbf16>
    %14 = arith.extf %13 : vector<8x256xbf16> to vector<8x256xf32>
    %15 = vector.shape_cast %14 : vector<8x256xf32> to vector<1x8x256xf32>
    %16 = vector.broadcast %3 : vector<2x1x256xf32> to vector<2x8x256xf32>
    %17 = vector.broadcast %11 : vector<1x8x256xf32> to vector<2x8x256xf32>
    %18 = arith.mulf %16, %17 : vector<2x8x256xf32>
    %19 = vector.broadcast %7 : vector<2x1x256xf32> to vector<2x8x256xf32>
    %20 = vector.broadcast %15 : vector<1x8x256xf32> to vector<2x8x256xf32>
    %21 = arith.mulf %19, %20 : vector<2x8x256xf32>
    %22 = arith.subf %18, %21 : vector<2x8x256xf32>
    %23 = vector.broadcast %7 : vector<2x1x256xf32> to vector<2x8x256xf32>
    %24 = vector.broadcast %11 : vector<1x8x256xf32> to vector<2x8x256xf32>
    %25 = arith.mulf %23, %24 : vector<2x8x256xf32>
    %26 = vector.broadcast %3 : vector<2x1x256xf32> to vector<2x8x256xf32>
    %27 = vector.broadcast %15 : vector<1x8x256xf32> to vector<2x8x256xf32>
    %28 = arith.mulf %26, %27 : vector<2x8x256xf32>
    %29 = arith.addf %25, %28 : vector<2x8x256xf32>
    %c0_14 = arith.constant 0 : index
    %c1_15 = arith.constant 1 : index
    %c0_16 = arith.constant 0 : index
    %c0_17 = arith.constant 0 : index
    %30 = vector.load %arg2[%c0_14, %c1_15, %c0_16, %c0_17] : memref<2x4x2x256xbf16, #tpu.memory_space<vmem>>, vector<1x1x2x256xbf16>
    %31 = vector.shape_cast %30 : vector<1x1x2x256xbf16> to vector<2x256xbf16>
    %32 = arith.extf %31 : vector<2x256xbf16> to vector<2x256xf32>
    %33 = vector.shape_cast %32 : vector<2x256xf32> to vector<2x1x256xf32>
    %c1_18 = arith.constant 1 : index
    %c1_19 = arith.constant 1 : index
    %c0_20 = arith.constant 0 : index
    %c0_21 = arith.constant 0 : index
    %34 = vector.load %arg2[%c1_18, %c1_19, %c0_20, %c0_21] : memref<2x4x2x256xbf16, #tpu.memory_space<vmem>>, vector<1x1x2x256xbf16>
    %35 = vector.shape_cast %34 : vector<1x1x2x256xbf16> to vector<2x256xbf16>
    %36 = arith.extf %35 : vector<2x256xbf16> to vector<2x256xf32>
    %37 = vector.shape_cast %36 : vector<2x256xf32> to vector<2x1x256xf32>
    %c0_22 = arith.constant 0 : index
    %c1_23 = arith.constant 1 : index
    %c0_24 = arith.constant 0 : index
    %c0_25 = arith.constant 0 : index
    %38 = vector.load %arg3[%c0_22, %c1_23, %c0_24, %c0_25] : memref<2x4x8x256xbf16, #tpu.memory_space<vmem>>, vector<1x1x8x256xbf16>
    %39 = vector.shape_cast %38 : vector<1x1x8x256xbf16> to vector<8x256xbf16>
    %40 = arith.extf %39 : vector<8x256xbf16> to vector<8x256xf32>
    %41 = vector.shape_cast %40 : vector<8x256xf32> to vector<1x8x256xf32>
    %c1_26 = arith.constant 1 : index
    %c1_27 = arith.constant 1 : index
    %c0_28 = arith.constant 0 : index
    %c0_29 = arith.constant 0 : index
    %42 = vector.load %arg3[%c1_26, %c1_27, %c0_28, %c0_29] : memref<2x4x8x256xbf16, #tpu.memory_space<vmem>>, vector<1x1x8x256xbf16>
    %43 = vector.shape_cast %42 : vector<1x1x8x256xbf16> to vector<8x256xbf16>
    %44 = arith.extf %43 : vector<8x256xbf16> to vector<8x256xf32>
    %45 = vector.shape_cast %44 : vector<8x256xf32> to vector<1x8x256xf32>
    %46 = vector.broadcast %33 : vector<2x1x256xf32> to vector<2x8x256xf32>
    %47 = vector.broadcast %41 : vector<1x8x256xf32> to vector<2x8x256xf32>
    %48 = arith.mulf %46, %47 : vector<2x8x256xf32>
    %49 = vector.broadcast %37 : vector<2x1x256xf32> to vector<2x8x256xf32>
    %50 = vector.broadcast %45 : vector<1x8x256xf32> to vector<2x8x256xf32>
    %51 = arith.mulf %49, %50 : vector<2x8x256xf32>
    %52 = arith.subf %48, %51 : vector<2x8x256xf32>
    %53 = vector.broadcast %37 : vector<2x1x256xf32> to vector<2x8x256xf32>
    %54 = vector.broadcast %41 : vector<1x8x256xf32> to vector<2x8x256xf32>
    %55 = arith.mulf %53, %54 : vector<2x8x256xf32>
    %56 = vector.broadcast %33 : vector<2x1x256xf32> to vector<2x8x256xf32>
    %57 = vector.broadcast %45 : vector<1x8x256xf32> to vector<2x8x256xf32>
    %58 = arith.mulf %56, %57 : vector<2x8x256xf32>
    %59 = arith.addf %55, %58 : vector<2x8x256xf32>
    %60 = arith.addf %22, %52 : vector<2x8x256xf32>
    %61 = arith.addf %29, %59 : vector<2x8x256xf32>
    %c0_30 = arith.constant 0 : index
    %c2 = arith.constant 2 : index
    %c0_31 = arith.constant 0 : index
    %c0_32 = arith.constant 0 : index
    %62 = vector.load %arg2[%c0_30, %c2, %c0_31, %c0_32] : memref<2x4x2x256xbf16, #tpu.memory_space<vmem>>, vector<1x1x2x256xbf16>
    %63 = vector.shape_cast %62 : vector<1x1x2x256xbf16> to vector<2x256xbf16>
    %64 = arith.extf %63 : vector<2x256xbf16> to vector<2x256xf32>
    %65 = vector.shape_cast %64 : vector<2x256xf32> to vector<2x1x256xf32>
    %c1_33 = arith.constant 1 : index
    %c2_34 = arith.constant 2 : index
    %c0_35 = arith.constant 0 : index
    %c0_36 = arith.constant 0 : index
    %66 = vector.load %arg2[%c1_33, %c2_34, %c0_35, %c0_36] : memref<2x4x2x256xbf16, #tpu.memory_space<vmem>>, vector<1x1x2x256xbf16>
    %67 = vector.shape_cast %66 : vector<1x1x2x256xbf16> to vector<2x256xbf16>
    %68 = arith.extf %67 : vector<2x256xbf16> to vector<2x256xf32>
    %69 = vector.shape_cast %68 : vector<2x256xf32> to vector<2x1x256xf32>
    %c0_37 = arith.constant 0 : index
    %c2_38 = arith.constant 2 : index
    %c0_39 = arith.constant 0 : index
    %c0_40 = arith.constant 0 : index
    %70 = vector.load %arg3[%c0_37, %c2_38, %c0_39, %c0_40] : memref<2x4x8x256xbf16, #tpu.memory_space<vmem>>, vector<1x1x8x256xbf16>
    %71 = vector.shape_cast %70 : vector<1x1x8x256xbf16> to vector<8x256xbf16>
    %72 = arith.extf %71 : vector<8x256xbf16> to vector<8x256xf32>
    %73 = vector.shape_cast %72 : vector<8x256xf32> to vector<1x8x256xf32>
    %c1_41 = arith.constant 1 : index
    %c2_42 = arith.constant 2 : index
    %c0_43 = arith.constant 0 : index
    %c0_44 = arith.constant 0 : index
    %74 = vector.load %arg3[%c1_41, %c2_42, %c0_43, %c0_44] : memref<2x4x8x256xbf16, #tpu.memory_space<vmem>>, vector<1x1x8x256xbf16>
    %75 = vector.shape_cast %74 : vector<1x1x8x256xbf16> to vector<8x256xbf16>
    %76 = arith.extf %75 : vector<8x256xbf16> to vector<8x256xf32>
    %77 = vector.shape_cast %76 : vector<8x256xf32> to vector<1x8x256xf32>
    %78 = vector.broadcast %65 : vector<2x1x256xf32> to vector<2x8x256xf32>
    %79 = vector.broadcast %73 : vector<1x8x256xf32> to vector<2x8x256xf32>
    %80 = arith.mulf %78, %79 : vector<2x8x256xf32>
    %81 = vector.broadcast %69 : vector<2x1x256xf32> to vector<2x8x256xf32>
    %82 = vector.broadcast %77 : vector<1x8x256xf32> to vector<2x8x256xf32>
    %83 = arith.mulf %81, %82 : vector<2x8x256xf32>
    %84 = arith.subf %80, %83 : vector<2x8x256xf32>
    %85 = vector.broadcast %69 : vector<2x1x256xf32> to vector<2x8x256xf32>
    %86 = vector.broadcast %73 : vector<1x8x256xf32> to vector<2x8x256xf32>
    %87 = arith.mulf %85, %86 : vector<2x8x256xf32>
    %88 = vector.broadcast %65 : vector<2x1x256xf32> to vector<2x8x256xf32>
    %89 = vector.broadcast %77 : vector<1x8x256xf32> to vector<2x8x256xf32>
    %90 = arith.mulf %88, %89 : vector<2x8x256xf32>
    %91 = arith.addf %87, %90 : vector<2x8x256xf32>
    %92 = arith.addf %60, %84 : vector<2x8x256xf32>
    %93 = arith.addf %61, %91 : vector<2x8x256xf32>
    %c0_45 = arith.constant 0 : index
    %c3 = arith.constant 3 : index
    %c0_46 = arith.constant 0 : index
    %c0_47 = arith.constant 0 : index
    %94 = vector.load %arg2[%c0_45, %c3, %c0_46, %c0_47] : memref<2x4x2x256xbf16, #tpu.memory_space<vmem>>, vector<1x1x2x256xbf16>
    %95 = vector.shape_cast %94 : vector<1x1x2x256xbf16> to vector<2x256xbf16>
    %96 = arith.extf %95 : vector<2x256xbf16> to vector<2x256xf32>
    %97 = vector.shape_cast %96 : vector<2x256xf32> to vector<2x1x256xf32>
    %c1_48 = arith.constant 1 : index
    %c3_49 = arith.constant 3 : index
    %c0_50 = arith.constant 0 : index
    %c0_51 = arith.constant 0 : index
    %98 = vector.load %arg2[%c1_48, %c3_49, %c0_50, %c0_51] : memref<2x4x2x256xbf16, #tpu.memory_space<vmem>>, vector<1x1x2x256xbf16>
    %99 = vector.shape_cast %98 : vector<1x1x2x256xbf16> to vector<2x256xbf16>
    %100 = arith.extf %99 : vector<2x256xbf16> to vector<2x256xf32>
    %101 = vector.shape_cast %100 : vector<2x256xf32> to vector<2x1x256xf32>
    %c0_52 = arith.constant 0 : index
    %c3_53 = arith.constant 3 : index
    %c0_54 = arith.constant 0 : index
    %c0_55 = arith.constant 0 : index
    %102 = vector.load %arg3[%c0_52, %c3_53, %c0_54, %c0_55] : memref<2x4x8x256xbf16, #tpu.memory_space<vmem>>, vector<1x1x8x256xbf16>
    %103 = vector.shape_cast %102 : vector<1x1x8x256xbf16> to vector<8x256xbf16>
    %104 = arith.extf %103 : vector<8x256xbf16> to vector<8x256xf32>
    %105 = vector.shape_cast %104 : vector<8x256xf32> to vector<1x8x256xf32>
    %c1_56 = arith.constant 1 : index
    %c3_57 = arith.constant 3 : index
    %c0_58 = arith.constant 0 : index
    %c0_59 = arith.constant 0 : index
    %106 = vector.load %arg3[%c1_56, %c3_57, %c0_58, %c0_59] : memref<2x4x8x256xbf16, #tpu.memory_space<vmem>>, vector<1x1x8x256xbf16>
    %107 = vector.shape_cast %106 : vector<1x1x8x256xbf16> to vector<8x256xbf16>
    %108 = arith.extf %107 : vector<8x256xbf16> to vector<8x256xf32>
    %109 = vector.shape_cast %108 : vector<8x256xf32> to vector<1x8x256xf32>
    %110 = vector.broadcast %97 : vector<2x1x256xf32> to vector<2x8x256xf32>
    %111 = vector.broadcast %105 : vector<1x8x256xf32> to vector<2x8x256xf32>
    %112 = arith.mulf %110, %111 : vector<2x8x256xf32>
    %113 = vector.broadcast %101 : vector<2x1x256xf32> to vector<2x8x256xf32>
    %114 = vector.broadcast %109 : vector<1x8x256xf32> to vector<2x8x256xf32>
    %115 = arith.mulf %113, %114 : vector<2x8x256xf32>
    %116 = arith.subf %112, %115 : vector<2x8x256xf32>
    %117 = vector.broadcast %101 : vector<2x1x256xf32> to vector<2x8x256xf32>
    %118 = vector.broadcast %105 : vector<1x8x256xf32> to vector<2x8x256xf32>
    %119 = arith.mulf %117, %118 : vector<2x8x256xf32>
    %120 = vector.broadcast %97 : vector<2x1x256xf32> to vector<2x8x256xf32>
    %121 = vector.broadcast %109 : vector<1x8x256xf32> to vector<2x8x256xf32>
    %122 = arith.mulf %120, %121 : vector<2x8x256xf32>
    %123 = arith.addf %119, %122 : vector<2x8x256xf32>
    %124 = arith.addf %92, %116 : vector<2x8x256xf32>
    %125 = arith.addf %93, %123 : vector<2x8x256xf32>
    %126 = arith.truncf %124 : vector<2x8x256xf32> to vector<2x8x256xbf16>
    %c0_60 = arith.constant 0 : index
    %c0_61 = arith.constant 0 : index
    %c0_62 = arith.constant 0 : index
    %c0_63 = arith.constant 0 : index
    %127 = vector.load %arg4[%c0_60, %c0_61, %c0_62, %c0_63] : memref<2x2x8x256xbf16, #tpu.memory_space<vmem>>, vector<1x2x8x256xbf16>
    %128 = vector.shape_cast %127 : vector<1x2x8x256xbf16> to vector<2x8x256xbf16>
    %129 = vector.shape_cast %126 : vector<2x8x256xbf16> to vector<1x2x8x256xbf16>
    tpu.vector_store %arg4[%c0_60, %c0_61, %c0_62, %c0_63], %129 {strides = array<i32>} : memref<2x2x8x256xbf16, #tpu.memory_space<vmem>>, vector<1x2x8x256xbf16>,
    %130 = arith.truncf %125 : vector<2x8x256xf32> to vector<2x8x256xbf16>
    %c1_64 = arith.constant 1 : index
    %c0_65 = arith.constant 0 : index
    %c0_66 = arith.constant 0 : index
    %c0_67 = arith.constant 0 : index
    %131 = vector.load %arg4[%c1_64, %c0_65, %c0_66, %c0_67] : memref<2x2x8x256xbf16, #tpu.memory_space<vmem>>, vector<1x2x8x256xbf16>
    %132 = vector.shape_cast %131 : vector<1x2x8x256xbf16> to vector<2x8x256xbf16>
    %133 = vector.shape_cast %130 : vector<2x8x256xbf16> to vector<1x2x8x256xbf16>
    tpu.vector_store %arg4[%c1_64, %c0_65, %c0_66, %c0_67], %133 {strides = array<i32>} : memref<2x2x8x256xbf16, #tpu.memory_space<vmem>>, vector<1x2x8x256xbf16>,
    return
  }
  func.func @transform_0(%arg0: i32, %arg1: i32) -> (i32, i32, i32, i32) {
    %c0_i32 = arith.constant 0 : i32
    %c0_i32_0 = arith.constant 0 : i32
    %c0_i32_1 = arith.constant 0 : i32
    %c0_i32_2 = arith.constant 0 : i32
    return %c0_i32, %c0_i32_0, %c0_i32_1, %arg1 : i32, i32, i32, i32
  }
  func.func @transform_1(%arg0: i32, %arg1: i32) -> (i32, i32, i32, i32) {
    %c0_i32 = arith.constant 0 : i32
    %c0_i32_0 = arith.constant 0 : i32
    %c0_i32_1 = arith.constant 0 : i32
    return %c0_i32, %c0_i32_0, %arg0, %arg1 : i32, i32, i32, i32
  }
  func.func @transform_2(%arg0: i32, %arg1: i32) -> (i32, i32, i32, i32) {
    %c0_i32 = arith.constant 0 : i32
    %c0_i32_0 = arith.constant 0 : i32
    %c0_i32_1 = arith.constant 0 : i32
    return %c0_i32, %c0_i32_0, %arg0, %arg1 : i32, i32, i32, i32
  }
}

</mosaic_0001>

<llo_original>
// kernel: spectral_conv3d_fast.1
$region0: #{spectral_conv3d_fast.1}
  #allocation0 [shape = 'u32[]', space=smem, size = 0x4, offset = 0x4, fixed_abs, tag = 'smem constant byte address 0x4 - core index']
  #allocation1 [shape = 'u32[144,128]{1,0:T(1,128)}', space=vmem, size = 0x12000, scoped, tag = 'internal scratch']
  %s0 = inlined_call_operand.vmem [shape: bf16[2,4,2,256], index: 0, kind: input, shape index: {}]
  %s1 = inlined_call_operand.vmem [shape: bf16[2,4,8,256], index: 1, kind: input, shape index: {}]
  %s2 = inlined_call_operand.vmem [shape: bf16[2,2,8,256], index: 2, kind: output, shape index: {}]
  %s3 = sld [smem:[#allocation0]]
  $region18: #{spectral_conv3d_fast.1} parent=0
    _
  %s5 = ssub.s32 1, %s3
  %s6 = scalar_select 0, %s5, %s3
  // Predicated region
  $region2: #{spectral_conv3d_fast.1} parent=0 // pred_check
    _
  $region3: #{spectral_conv3d_fast.1} parent=0 // pred_check_branch
    %8 = sbr.rel (0) target = $region5
  $region4: #{spectral_conv3d_fast.1} parent=0 // pred_region
    _
  $region5: #{spectral_conv3d_fast.1} parent=0 // pred_fallthru
    _
  // Predicated region
  $region6: #{spectral_conv3d_fast.1} parent=0 // pred_check
    _
  $region7: #{spectral_conv3d_fast.1} parent=0 // pred_check_branch
    %10 = sbr.rel (0) target = $region9
  $region8: #{spectral_conv3d_fast.1} parent=0 // pred_region
    _
  $region9: #{spectral_conv3d_fast.1} parent=0 // pred_fallthru
    _
  %v11 = vld [vmem:[%s0] sm:$0x3]
  %v12 = vunpack.c.l.bf16 %v11
  %v15 = vunpack.c.l.s4 1966171168
  %v16 = vunpack.c.0.s8 %v15
  %v17 = vlaneseq
  %v18 = vshrl.u32 %v17, 7
  %v19 = vsub.s32 %v16, %v18
  %v20 = vrot.slane %v12, %v19
  %v21 = vcombine.high %v20, %v20
  %s22 = scalar_lea.vmem %s0, 8
  %v23 = vld [vmem:[%s22] sm:$0x3]
  %v24 = vunpack.c.l.bf16 %v23
  %v27 = vunpack.c.l.s4 1966171168
  %v28 = vunpack.c.0.s8 %v27
  %v29 = vlaneseq
  %v30 = vshrl.u32 %v29, 7
  %v31 = vsub.s32 %v28, %v30
  %v32 = vrot.slane %v24, %v31
  %v33 = vcombine.high %v32, %v32
  %v34 = vld [vmem:[%s1] sm:$0xff]
  %v35 = vunpack.c.l.bf16 %v34
  %v36 = vunpack.c.h.bf16 %v34
  %s37 = scalar_lea.vmem %s1, 32
  %v38 = vld [vmem:[%s37] sm:$0xff]
  %v39 = vunpack.c.l.bf16 %v38
  %v40 = vunpack.c.h.bf16 %v38
  %v41 = vlaneseq
  %v42 = vshrl.u32 %v41, 7
  %v43 = vsub.s32 0, %v42
  %v44 = vrot.slane %v20, %v43
  %v45 = vlaneseq
  %v46 = vshrl.u32 %v45, 7
  %v47 = vsub.s32 1, %v46
  %v48 = vrot.slane %v20, %v47
  %v49 = vlaneseq
  %v50 = vshrl.u32 %v49, 7
  %v51 = vsub.s32 0, %v50
  %v52 = vrot.slane %v21, %v51
  %v53 = vlaneseq
  %v54 = vshrl.u32 %v53, 7
  %v55 = vsub.s32 1, %v54
  %v56 = vrot.slane %v21, %v55
  %v61 = vmul.f32 %v44, %v35
  %v62 = vmul.f32 %v48, %v36
  %v63 = vmul.f32 %v52, %v35
  %v64 = vmul.f32 %v56, %v36
  %v65 = vlaneseq
  %v66 = vshrl.u32 %v65, 7
  %v67 = vsub.s32 0, %v66
  %v68 = vrot.slane %v32, %v67
  %v69 = vlaneseq
  %v70 = vshrl.u32 %v69, 7
  %v71 = vsub.s32 1, %v70
  %v72 = vrot.slane %v32, %v71
  %v73 = vlaneseq
  %v74 = vshrl.u32 %v73, 7
  %v75 = vsub.s32 0, %v74
  %v76 = vrot.slane %v33, %v75
  %v77 = vlaneseq
  %v78 = vshrl.u32 %v77, 7
  %v79 = vsub.s32 1, %v78
  %v80 = vrot.slane %v33, %v79
  %v85 = vmul.f32 %v68, %v39
  %v86 = vmul.f32 %v72, %v40
  %v87 = vmul.f32 %v76, %v39
  %v88 = vmul.f32 %v80, %v40
  %v89 = vsub.f32 %v61, %v85
  %v90 = vsub.f32 %v62, %v86
  %v91 = vsub.f32 %v63, %v87
  %v92 = vsub.f32 %v64, %v88
  %v93 = vmul.f32 %v68, %v35
  %v94 = vmul.f32 %v72, %v36
  %v95 = vmul.f32 %v76, %v35
  %v96 = vmul.f32 %v80, %v36
  %v97 = vmul.f32 %v44, %v39
  %v98 = vmul.f32 %v48, %v40
  %v99 = vmul.f32 %v52, %v39
  %v100 = vmul.f32 %v56, %v40
  %v101 = vadd.f32 %v93, %v97
  %v102 = vadd.f32 %v94, %v98
  %v103 = vadd.f32 %v95, %v99
  %v104 = vadd.f32 %v96, %v100
  %s105 = scalar_lea.vmem %s0, 2
  %v106 = vld [vmem:[%s105] sm:$0x3]
  %v107 = vunpack.c.l.bf16 %v106
  %v110 = vunpack.c.l.s4 1966171168
  %v111 = vunpack.c.0.s8 %v110
  %v112 = vlaneseq
  %v113 = vshrl.u32 %v112, 7
  %v114 = vsub.s32 %v111, %v113
  %v115 = vrot.slane %v107, %v114
  %v116 = vcombine.high %v115, %v115
  %s117 = scalar_lea.vmem %s0, 10
  %v118 = vld [vmem:[%s117] sm:$0x3]
  %v119 = vunpack.c.l.bf16 %v118
  %v122 = vunpack.c.l.s4 1966171168
  %v123 = vunpack.c.0.s8 %v122
  %v124 = vlaneseq
  %v125 = vshrl.u32 %v124, 7
  %v126 = vsub.s32 %v123, %v125
  %v127 = vrot.slane %v119, %v126
  %v128 = vcombine.high %v127, %v127
  %s129 = scalar_lea.vmem %s1, 8
  %v130 = vld [vmem:[%s129] sm:$0xff]
  %v131 = vunpack.c.l.bf16 %v130
  %v132 = vunpack.c.h.bf16 %v130
  %s133 = scalar_lea.vmem %s1, 40
  %v134 = vld [vmem:[%s133] sm:$0xff]
  %v135 = vunpack.c.l.bf16 %v134
  %v136 = vunpack.c.h.bf16 %v134
  %v137 = vlaneseq
  %v138 = vshrl.u32 %v137, 7
  %v139 = vsub.s32 0, %v138
  %v140 = vrot.slane %v115, %v139
  %v141 = vlaneseq
  %v142 = vshrl.u32 %v141, 7
  %v143 = vsub.s32 1, %v142
  %v144 = vrot.slane %v115, %v143
  %v145 = vlaneseq
  %v146 = vshrl.u32 %v145, 7
  %v147 = vsub.s32 0, %v146
  %v148 = vrot.slane %v116, %v147
  %v149 = vlaneseq
  %v150 = vshrl.u32 %v149, 7
  %v151 = vsub.s32 1, %v150
  %v152 = vrot.slane %v116, %v151
  %v157 = vmul.f32 %v140, %v131
  %v158 = vmul.f32 %v144, %v132
  %v159 = vmul.f32 %v148, %v131
  %v160 = vmul.f32 %v152, %v132
  %v161 = vlaneseq
  %v162 = vshrl.u32 %v161, 7
  %v163 = vsub.s32 0, %v162
  %v164 = vrot.slane %v127, %v163
  %v165 = vlaneseq
  %v166 = vshrl.u32 %v165, 7
  %v167 = vsub.s32 1, %v166
  %v168 = vrot.slane %v127, %v167
  %v169 = vlaneseq
  %v170 = vshrl.u32 %v169, 7
  %v171 = vsub.s32 0, %v170
  %v172 = vrot.slane %v128, %v171
  %v173 = vlaneseq
  %v174 = vshrl.u32 %v173, 7
  %v175 = vsub.s32 1, %v174
  %v176 = vrot.slane %v128, %v175
  %v181 = vmul.f32 %v164, %v135
  %v182 = vmul.f32 %v168, %v136
  %v183 = vmul.f32 %v172, %v135
  %v184 = vmul.f32 %v176, %v136
  %v185 = vsub.f32 %v157, %v181
  %v186 = vsub.f32 %v158, %v182
  %v187 = vsub.f32 %v159, %v183
  %v188 = vsub.f32 %v160, %v184
  %v189 = vmul.f32 %v164, %v131
  %v190 = vmul.f32 %v168, %v132
  %v191 = vmul.f32 %v172, %v131
  %v192 = vmul.f32 %v176, %v132
  %v193 = vmul.f32 %v140, %v135
  %v194 = vmul.f32 %v144, %v136
  %v195 = vmul.f32 %v148, %v135
  %v196 = vmul.f32 %v152, %v136
  %v197 = vadd.f32 %v189, %v193
  %v198 = vadd.f32 %v190, %v194
  %v199 = vadd.f32 %v191, %v195
  %v200 = vadd.f32 %v192, %v196
  %v201 = vadd.f32 %v89, %v185
  %v202 = vadd.f32 %v90, %v186
  %v203 = vadd.f32 %v91, %v187
  %v204 = vadd.f32 %v92, %v188
  %v205 = vadd.f32 %v101, %v197
  %v206 = vadd.f32 %v102, %v198
  %v207 = vadd.f32 %v103, %v199
  %v208 = vadd.f32 %v104, %v200
  %s209 = scalar_lea.vmem %s0, 4
  %v210 = vld [vmem:[%s209] sm:$0x3]
  %v211 = vunpack.c.l.bf16 %v210
  %v214 = vunpack.c.l.s4 1966171168
  %v215 = vunpack.c.0.s8 %v214
  %v216 = vlaneseq
  %v217 = vshrl.u32 %v216, 7
  %v218 = vsub.s32 %v215, %v217
  %v219 = vrot.slane %v211, %v218
  %v220 = vcombine.high %v219, %v219
  %s221 = scalar_lea.vmem %s0, 12
  %v222 = vld [vmem:[%s221] sm:$0x3]
  %v223 = vunpack.c.l.bf16 %v222
  %v226 = vunpack.c.l.s4 1966171168
  %v227 = vunpack.c.0.s8 %v226
  %v228 = vlaneseq
  %v229 = vshrl.u32 %v228, 7
  %v230 = vsub.s32 %v227, %v229
  %v231 = vrot.slane %v223, %v230
  %v232 = vcombine.high %v231, %v231
  %s233 = scalar_lea.vmem %s1, 16
  %v234 = vld [vmem:[%s233] sm:$0xff]
  %v235 = vunpack.c.l.bf16 %v234
  %v236 = vunpack.c.h.bf16 %v234
  %s237 = scalar_lea.vmem %s1, 48
  %v238 = vld [vmem:[%s237] sm:$0xff]
  %v239 = vunpack.c.l.bf16 %v238
  %v240 = vunpack.c.h.bf16 %v238
  %v241 = vlaneseq
  %v242 = vshrl.u32 %v241, 7
  %v243 = vsub.s32 0, %v242
  %v244 = vrot.slane %v219, %v243
  %v245 = vlaneseq
  %v246 = vshrl.u32 %v245, 7
  %v247 = vsub.s32 1, %v246
  %v248 = vrot.slane %v219, %v247
  %v249 = vlaneseq
  %v250 = vshrl.u32 %v249, 7
  %v251 = vsub.s32 0, %v250
  %v252 = vrot.slane %v220, %v251
  %v253 = vlaneseq
  %v254 = vshrl.u32 %v253, 7
  %v255 = vsub.s32 1, %v254
  %v256 = vrot.slane %v220, %v255
  %v261 = vmul.f32 %v244, %v235
  %v262 = vmul.f32 %v248, %v236
  %v263 = vmul.f32 %v252, %v235
  %v264 = vmul.f32 %v256, %v236
  %v265 = vlaneseq
  %v266 = vshrl.u32 %v265, 7
  %v267 = vsub.s32 0, %v266
  %v268 = vrot.slane %v231, %v267
  %v269 = vlaneseq
  %v270 = vshrl.u32 %v269, 7
  %v271 = vsub.s32 1, %v270
  %v272 = vrot.slane %v231, %v271
  %v273 = vlaneseq
  %v274 = vshrl.u32 %v273, 7
  %v275 = vsub.s32 0, %v274
  %v276 = vrot.slane %v232, %v275
  %v277 = vlaneseq
  %v278 = vshrl.u32 %v277, 7
  %v279 = vsub.s32 1, %v278
  %v280 = vrot.slane %v232, %v279
  %v285 = vmul.f32 %v268, %v239
  %v286 = vmul.f32 %v272, %v240
  %v287 = vmul.f32 %v276, %v239
  %v288 = vmul.f32 %v280, %v240
  %v289 = vsub.f32 %v261, %v285
  %v290 = vsub.f32 %v262, %v286
  %v291 = vsub.f32 %v263, %v287
  %v292 = vsub.f32 %v264, %v288
  %v293 = vmul.f32 %v268, %v235
  %v294 = vmul.f32 %v272, %v236
  %v295 = vmul.f32 %v276, %v235
  %v296 = vmul.f32 %v280, %v236
  %v297 = vmul.f32 %v244, %v239
  %v298 = vmul.f32 %v248, %v240
  %v299 = vmul.f32 %v252, %v239
  %v300 = vmul.f32 %v256, %v240
  %v301 = vadd.f32 %v293, %v297
  %v302 = vadd.f32 %v294, %v298
  %v303 = vadd.f32 %v295, %v299
  %v304 = vadd.f32 %v296, %v300
  %v305 = vadd.f32 %v201, %v289
  %v306 = vadd.f32 %v202, %v290
  %v307 = vadd.f32 %v203, %v291
  %v308 = vadd.f32 %v204, %v292
  %v309 = vadd.f32 %v205, %v301
  %v310 = vadd.f32 %v206, %v302
  %v311 = vadd.f32 %v207, %v303
  %v312 = vadd.f32 %v208, %v304
  %s313 = scalar_lea.vmem %s0, 6
  %v314 = vld [vmem:[%s313] sm:$0x3]
  %v315 = vunpack.c.l.bf16 %v314
  %v318 = vunpack.c.l.s4 1966171168
  %v319 = vunpack.c.0.s8 %v318
  %v320 = vlaneseq
  %v321 = vshrl.u32 %v320, 7
  %v322 = vsub.s32 %v319, %v321
  %v323 = vrot.slane %v315, %v322
  %v324 = vcombine.high %v323, %v323
  %s325 = scalar_lea.vmem %s0, 14
  %v326 = vld [vmem:[%s325] sm:$0x3]
  %v327 = vunpack.c.l.bf16 %v326
  %v330 = vunpack.c.l.s4 1966171168
  %v331 = vunpack.c.0.s8 %v330
  %v332 = vlaneseq
  %v333 = vshrl.u32 %v332, 7
  %v334 = vsub.s32 %v331, %v333
  %v335 = vrot.slane %v327, %v334
  %v336 = vcombine.high %v335, %v335
  %s337 = scalar_lea.vmem %s1, 24
  %v338 = vld [vmem:[%s337] sm:$0xff]
  %v339 = vunpack.c.l.bf16 %v338
  %v340 = vunpack.c.h.bf16 %v338
  %s341 = scalar_lea.vmem %s1, 56
  %v342 = vld [vmem:[%s341] sm:$0xff]
  %v343 = vunpack.c.l.bf16 %v342
  %v344 = vunpack.c.h.bf16 %v342
  %v345 = vlaneseq
  %v346 = vshrl.u32 %v345, 7
  %v347 = vsub.s32 0, %v346
  %v348 = vrot.slane %v323, %v347
  %v349 = vlaneseq
  %v350 = vshrl.u32 %v349, 7
  %v351 = vsub.s32 1, %v350
  %v352 = vrot.slane %v323, %v351
  %v353 = vlaneseq
  %v354 = vshrl.u32 %v353, 7
  %v355 = vsub.s32 0, %v354
  %v356 = vrot.slane %v324, %v355
  %v357 = vlaneseq
  %v358 = vshrl.u32 %v357, 7
  %v359 = vsub.s32 1, %v358
  %v360 = vrot.slane %v324, %v359
  %v365 = vmul.f32 %v348, %v339
  %v366 = vmul.f32 %v352, %v340
  %v367 = vmul.f32 %v356, %v339
  %v368 = vmul.f32 %v360, %v340
  %v369 = vlaneseq
  %v370 = vshrl.u32 %v369, 7
  %v371 = vsub.s32 0, %v370
  %v372 = vrot.slane %v335, %v371
  %v373 = vlaneseq
  %v374 = vshrl.u32 %v373, 7
  %v375 = vsub.s32 1, %v374
  %v376 = vrot.slane %v335, %v375
  %v377 = vlaneseq
  %v378 = vshrl.u32 %v377, 7
  %v379 = vsub.s32 0, %v378
  %v380 = vrot.slane %v336, %v379
  %v381 = vlaneseq
  %v382 = vshrl.u32 %v381, 7
  %v383 = vsub.s32 1, %v382
  %v384 = vrot.slane %v336, %v383
  %v389 = vmul.f32 %v372, %v343
  %v390 = vmul.f32 %v376, %v344
  %v391 = vmul.f32 %v380, %v343
  %v392 = vmul.f32 %v384, %v344
  %v393 = vsub.f32 %v365, %v389
  %v394 = vsub.f32 %v366, %v390
  %v395 = vsub.f32 %v367, %v391
  %v396 = vsub.f32 %v368, %v392
  %v397 = vmul.f32 %v372, %v339
  %v398 = vmul.f32 %v376, %v340
  %v399 = vmul.f32 %v380, %v339
  %v400 = vmul.f32 %v384, %v340
  %v401 = vmul.f32 %v348, %v343
  %v402 = vmul.f32 %v352, %v344
  %v403 = vmul.f32 %v356, %v343
  %v404 = vmul.f32 %v360, %v344
  %v405 = vadd.f32 %v397, %v401
  %v406 = vadd.f32 %v398, %v402
  %v407 = vadd.f32 %v399, %v403
  %v408 = vadd.f32 %v400, %v404
  %v409 = vadd.f32 %v305, %v393
  %v410 = vadd.f32 %v306, %v394
  %v411 = vadd.f32 %v307, %v395
  %v412 = vadd.f32 %v308, %v396
  %v413 = vadd.f32 %v309, %v405
  %v414 = vadd.f32 %v310, %v406
  %v415 = vadd.f32 %v311, %v407
  %v416 = vadd.f32 %v312, %v408
  %v417 = vpack.c.bf16 %v409, %v409
  %v418 = vpack.c.bf16 %v410, %v410
  %v419 = vpack.c.bf16 %v411, %v411
  %v420 = vpack.c.bf16 %v412, %v412
  %v425 = vunpack.c.l.b16 %v417
  %v426 = vunpack.c.l.b16 %v418
  %v427 = vunpack.c.l.b16 %v419
  %v428 = vunpack.c.l.b16 %v420
  %v429 = vpack.c.b16 %v426, %v425
  %v430 = vpack.c.b16 %v428, %v427
  %433 = vst [vmem:[%s2] sm:$0xff] %v429
  %434 = vst [vmem:[%s2 + $0x8] sm:$0xff] %v430
  %v435 = vpack.c.bf16 %v413, %v413
  %v436 = vpack.c.bf16 %v414, %v414
  %v437 = vpack.c.bf16 %v415, %v415
  %v438 = vpack.c.bf16 %v416, %v416
  %v443 = vunpack.c.l.b16 %v435
  %v444 = vunpack.c.l.b16 %v436
  %v445 = vunpack.c.l.b16 %v437
  %v446 = vunpack.c.l.b16 %v438
  %v447 = vpack.c.b16 %v444, %v443
  %v448 = vpack.c.b16 %v446, %v445
  %s451 = scalar_lea.vmem %s2, 16
  %452 = vst [vmem:[%s451] sm:$0xff] %v447
  %453 = vst [vmem:[%s451 + $0x8] sm:$0xff] %v448
  // Predicated region
  $region10: #{spectral_conv3d_fast.1} parent=0 // pred_check
    _
  $region11: #{spectral_conv3d_fast.1} parent=0 // pred_check_branch
    %455 = sbr.rel (0) target = $region13
  $region12: #{spectral_conv3d_fast.1} parent=0 // pred_region
    _
  $region13: #{spectral_conv3d_fast.1} parent=0 // pred_fallthru
    _
  // Predicated region
  $region14: #{spectral_conv3d_fast.1} parent=0 // pred_check
    _
  $region15: #{spectral_conv3d_fast.1} parent=0 // pred_check_branch
    %457 = sbr.rel (0) target = $region17
  $region16: #{spectral_conv3d_fast.1} parent=0 // pred_region
    _
  $region17: #{spectral_conv3d_fast.1} parent=0 // pred_fallthru
    _

// kernel: reverse.1
$region0: #{reverse.1}
  #allocation0 [shape = 's32[1]{0}', space=sflag, size = 0x4, scoped, tag = 'scoped memory for reverse.1']
  %s0 = inlined_call_operand.vmem [shape: f32[2,4,16,16,7], index: 0, kind: input, shape index: {}]
  %s1 = inlined_call_operand.vmem [shape: f32[2,4,16,16,7], index: 1, kind: output, shape index: {}]
  %s2 = scalar_lea.vmem %s0, 96
  %v3 = vld [vmem:[%s2] sm:$0xff]
  %4 = vst [vmem:[%s1] sm:$0xff] %v3
  %s5 = scalar_lea.vmem %s0, 544
  %v6 = vld [vmem:[%s5] sm:$0xff]
  %s7 = scalar_lea.vmem %s1, 448
  %8 = vst [vmem:[%s7] sm:$0xff] %v6
  %s9 = scalar_lea.vmem %s0, 208
  %v10 = vld [vmem:[%s9] sm:$0xff]
  %s11 = scalar_lea.vmem %s1, 112
  %12 = vst [vmem:[%s11] sm:$0xff] %v10
  %s13 = scalar_lea.vmem %s0, 656
  %v14 = vld [vmem:[%s13] sm:$0xff]
  %s15 = scalar_lea.vmem %s1, 560
  %16 = vst [vmem:[%s15] sm:$0xff] %v14
  %s17 = scalar_lea.vmem %s0, 320
  %v18 = vld [vmem:[%s17] sm:$0xff]
  %s19 = scalar_lea.vmem %s1, 224
  %20 = vst [vmem:[%s19] sm:$0xff] %v18
  %s21 = scalar_lea.vmem %s0, 768
  %v22 = vld [vmem:[%s21] sm:$0xff]
  %s23 = scalar_lea.vmem %s1, 672
  %24 = vst [vmem:[%s23] sm:$0xff] %v22
  %s25 = scalar_lea.vmem %s0, 432
  %v26 = vld [vmem:[%s25] sm:$0xff]
  %s27 = scalar_lea.vmem %s1, 336
  %28 = vst [vmem:[%s27] sm:$0xff] %v26
  %s29 = scalar_lea.vmem %s0, 880
  %v30 = vld [vmem:[%s29] sm:$0xff]
  %s31 = scalar_lea.vmem %s1, 784
  %32 = vst [vmem:[%s31] sm:$0xff] %v30
  %s33 = scalar_lea.vmem %s0, 80
  %v34 = vld [vmem:[%s33] sm:$0xff]
  %s35 = scalar_lea.vmem %s1, 16
  %36 = vst [vmem:[%s35] sm:$0xff] %v34
  %s37 = scalar_lea.vmem %s0, 528
  %v38 = vld [vmem:[%s37] sm:$0xff]
  %s39 = scalar_lea.vmem %s1, 464
  %40 = vst [vmem:[%s39] sm:$0xff] %v38
  %s41 = scalar_lea.vmem %s0, 192
  %v42 = vld [vmem:[%s41] sm:$0xff]
  %s43 = scalar_lea.vmem %s1, 128
  %44 = vst [vmem:[%s43] sm:$0xff] %v42
  %s45 = scalar_lea.vmem %s0, 640
  %v46 = vld [vmem:[%s45] sm:$0xff]
  %s47 = scalar_lea.vmem %s1, 576
  %48 = vst [vmem:[%s47] sm:$0xff] %v46
  %s49 = scalar_lea.vmem %s0, 304
  %v50 = vld [vmem:[%s49] sm:$0xff]
  %s51 = scalar_lea.vmem %s1, 240
  %52 = vst [vmem:[%s51] sm:$0xff] %v50
  %s53 = scalar_lea.vmem %s0, 752
  %v54 = vld [vmem:[%s53] sm:$0xff]
  %s55 = scalar_lea.vmem %s1, 688
  %56 = vst [vmem:[%s55] sm:$0xff] %v54
  %s57 = scalar_lea.vmem %s0, 416
  %v58 = vld [vmem:[%s57] sm:$0xff]
  %s59 = scalar_lea.vmem %s1, 352
  %60 = vst [vmem:[%s59] sm:$0xff] %v58
  %s61 = scalar_lea.vmem %s0, 864
  %v62 = vld [vmem:[%s61] sm:$0xff]
  %s63 = scalar_lea.vmem %s1, 800
  %64 = vst [vmem:[%s63] sm:$0xff] %v62
  %s65 = scalar_lea.vmem %s0, 64
  %v66 = vld [vmem:[%s65] sm:$0xff]
  %s67 = scalar_lea.vmem %s1, 32
  %68 = vst [vmem:[%s67] sm:$0xff] %v66
  %s69 = scalar_lea.vmem %s0, 512
  %v70 = vld [vmem:[%s69] sm:$0xff]
  %s71 = scalar_lea.vmem %s1, 480
  %72 = vst [vmem:[%s71] sm:$0xff] %v70
  %s73 = scalar_lea.vmem %s0, 176
  %v74 = vld [vmem:[%s73] sm:$0xff]
  %s75 = scalar_lea.vmem %s1, 144
  %76 = vst [vmem:[%s75] sm:$0xff] %v74
  %s77 = scalar_lea.vmem %s0, 624
  %v78 = vld [vmem:[%s77] sm:$0xff]
  %s79 = scalar_lea.vmem %s1, 592
  %80 = vst [vmem:[%s79] sm:$0xff] %v78
  %s81 = scalar_lea.vmem %s0, 288
  %v82 = vld [vmem:[%s81] sm:$0xff]
  %s83 = scalar_lea.vmem %s1, 256
  %84 = vst [vmem:[%s83] sm:$0xff] %v82
  %s85 = scalar_lea.vmem %s0, 736
  %v86 = vld [vmem:[%s85] sm:$0xff]
  %s87 = scalar_lea.vmem %s1, 704
  %88 = vst [vmem:[%s87] sm:$0xff] %v86
  %s89 = scalar_lea.vmem %s0, 400
  %v90 = vld [vmem:[%s89] sm:$0xff]
  %s91 = scalar_lea.vmem %s1, 368
  %92 = vst [vmem:[%s91] sm:$0xff] %v90
  %s93 = scalar_lea.vmem %s0, 848
  %v94 = vld [vmem:[%s93] sm:$0xff]
  %s95 = scalar_lea.vmem %s1, 816
  %96 = vst [vmem:[%s95] sm:$0xff] %v94
  %s97 = scalar_lea.vmem %s0, 48
  %v98 = vld [vmem:[%s97] sm:$0xff]
  %s99 = scalar_lea.vmem %s1, 48
  %100 = vst [vmem:[%s99] sm:$0xff] %v98
  %s101 = scalar_lea.vmem %s0, 496
  %v102 = vld [vmem:[%s101] sm:$0xff]
  %s103 = scalar_lea.vmem %s1, 496
  %104 = vst [vmem:[%s103] sm:$0xff] %v102
  %s105 = scalar_lea.vmem %s0, 160
  %v106 = vld [vmem:[%s105] sm:$0xff]
  %s107 = scalar_lea.vmem %s1, 160
  %108 = vst [vmem:[%s107] sm:$0xff] %v106
  %s109 = scalar_lea.vmem %s0, 608
  %v110 = vld [vmem:[%s109] sm:$0xff]
  %s111 = scalar_lea.vmem %s1, 608
  %112 = vst [vmem:[%s111] sm:$0xff] %v110
  %s113 = scalar_lea.vmem %s0, 272
  %v114 = vld [vmem:[%s113] sm:$0xff]
  %s115 = scalar_lea.vmem %s1, 272
  %116 = vst [vmem:[%s115] sm:$0xff] %v114
  %s117 = scalar_lea.vmem %s0, 720
  %v118 = vld [vmem:[%s117] sm:$0xff]
  %s119 = scalar_lea.vmem %s1, 720
  %120 = vst [vmem:[%s119] sm:$0xff] %v118
  %s121 = scalar_lea.vmem %s0, 384
  %v122 = vld [vmem:[%s121] sm:$0xff]
  %s123 = scalar_lea.vmem %s1, 384
  %124 = vst [vmem:[%s123] sm:$0xff] %v122
  %s125 = scalar_lea.vmem %s0, 832
  %v126 = vld [vmem:[%s125] sm:$0xff]
  %s127 = scalar_lea.vmem %s1, 832
  %128 = vst [vmem:[%s127] sm:$0xff] %v126
  %s129 = scalar_lea.vmem %s0, 32
  %v130 = vld [vmem:[%s129] sm:$0xff]
  %s131 = scalar_lea.vmem %s1, 64
  %132 = vst [vmem:[%s131] sm:$0xff] %v130
  %s133 = scalar_lea.vmem %s0, 480
  %v134 = vld [vmem:[%s133] sm:$0xff]
  %s135 = scalar_lea.vmem %s1, 512
  %136 = vst [vmem:[%s135] sm:$0xff] %v134
  %s137 = scalar_lea.vmem %s0, 144
  %v138 = vld [vmem:[%s137] sm:$0xff]
  %s139 = scalar_lea.vmem %s1, 176
  %140 = vst [vmem:[%s139] sm:$0xff] %v138
  %s141 = scalar_lea.vmem %s0, 592
  %v142 = vld [vmem:[%s141] sm:$0xff]
  %s143 = scalar_lea.vmem %s1, 624
  %144 = vst [vmem:[%s143] sm:$0xff] %v142
  %s145 = scalar_lea.vmem %s0, 256
  %v146 = vld [vmem:[%s145] sm:$0xff]
  %s147 = scalar_lea.vmem %s1, 288
  %148 = vst [vmem:[%s147] sm:$0xff] %v146
  %s149 = scalar_lea.vmem %s0, 704
  %v150 = vld [vmem:[%s149] sm:$0xff]
  %s151 = scalar_lea.vmem %s1, 736
  %152 = vst [vmem:[%s151] sm:$0xff] %v150
  %s153 = scalar_lea.vmem %s0, 368
  %v154 = vld [vmem:[%s153] sm:$0xff]
  %s155 = scalar_lea.vmem %s1, 400
  %156 = vst [vmem:[%s155] sm:$0xff] %v154
  %s157 = scalar_lea.vmem %s0, 816
  %v158 = vld [vmem:[%s157] sm:$0xff]
  %s159 = scalar_lea.vmem %s1, 848
  %160 = vst [vmem:[%s159] sm:$0xff] %v158
  %s161 = scalar_lea.vmem %s0, 16
  %v162 = vld [vmem:[%s161] sm:$0xff]
  %s163 = scalar_lea.vmem %s1, 80
  %164 = vst [vmem:[%s163] sm:$0xff] %v162
  %s165 = scalar_lea.vmem %s0, 464
  %v166 = vld [vmem:[%s165] sm:$0xff]
  %s167 = scalar_lea.vmem %s1, 528
  %168 = vst [vmem:[%s167] sm:$0xff] %v166
  %s169 = scalar_lea.vmem %s0, 128
  %v170 = vld [vmem:[%s169] sm:$0xff]
  %s171 = scalar_lea.vmem %s1, 192
  %172 = vst [vmem:[%s171] sm:$0xff] %v170
  %s173 = scalar_lea.vmem %s0, 576
  %v174 = vld [vmem:[%s173] sm:$0xff]
  %s175 = scalar_lea.vmem %s1, 640
  %176 = vst [vmem:[%s175] sm:$0xff] %v174
  %s177 = scalar_lea.vmem %s0, 240
  %v178 = vld [vmem:[%s177] sm:$0xff]
  %s179 = scalar_lea.vmem %s1, 304
  %180 = vst [vmem:[%s179] sm:$0xff] %v178
  %s181 = scalar_lea.vmem %s0, 688
  %v182 = vld [vmem:[%s181] sm:$0xff]
  %s183 = scalar_lea.vmem %s1, 752
  %184 = vst [vmem:[%s183] sm:$0xff] %v182
  %s185 = scalar_lea.vmem %s0, 352
  %v186 = vld [vmem:[%s185] sm:$0xff]
  %s187 = scalar_lea.vmem %s1, 416
  %188 = vst [vmem:[%s187] sm:$0xff] %v186
  %s189 = scalar_lea.vmem %s0, 800
  %v190 = vld [vmem:[%s189] sm:$0xff]
  %s191 = scalar_lea.vmem %s1, 864
  %192 = vst [vmem:[%s191] sm:$0xff] %v190
  %v193 = vld [vmem:[%s0] sm:$0xff]
  %s194 = scalar_lea.vmem %s1, 96
  %195 = vst [vmem:[%s194] sm:$0xff] %v193
  %s196 = scalar_lea.vmem %s0, 448
  %v197 = vld [vmem:[%s196] sm:$0xff]
  %s198 = scalar_lea.vmem %s1, 544
  %199 = vst [vmem:[%s198] sm:$0xff] %v197
  %s200 = scalar_lea.vmem %s0, 112
  %v201 = vld [vmem:[%s200] sm:$0xff]
  %s202 = scalar_lea.vmem %s1, 208
  %203 = vst [vmem:[%s202] sm:$0xff] %v201
  %s204 = scalar_lea.vmem %s0, 560
  %v205 = vld [vmem:[%s204] sm:$0xff]
  %s206 = scalar_lea.vmem %s1, 656
  %207 = vst [vmem:[%s206] sm:$0xff] %v205
  %s208 = scalar_lea.vmem %s0, 224
  %v209 = vld [vmem:[%s208] sm:$0xff]
  %s210 = scalar_lea.vmem %s1, 320
  %211 = vst [vmem:[%s210] sm:$0xff] %v209
  %s212 = scalar_lea.vmem %s0, 672
  %v213 = vld [vmem:[%s212] sm:$0xff]
  %s214 = scalar_lea.vmem %s1, 768
  %215 = vst [vmem:[%s214] sm:$0xff] %v213
  %s216 = scalar_lea.vmem %s0, 336
  %v217 = vld [vmem:[%s216] sm:$0xff]
  %s218 = scalar_lea.vmem %s1, 432
  %219 = vst [vmem:[%s218] sm:$0xff] %v217
  %s220 = scalar_lea.vmem %s0, 784
  %v221 = vld [vmem:[%s220] sm:$0xff]
  %s222 = scalar_lea.vmem %s1, 880
  %223 = vst [vmem:[%s222] sm:$0xff] %v221
  %s224 = scalar_lea.vmem %s0, 104
  %v225 = vld [vmem:[%s224] sm:$0xff]
  %s226 = scalar_lea.vmem %s1, 8
  %227 = vst [vmem:[%s226] sm:$0xff] %v225
  %s228 = scalar_lea.vmem %s0, 552
  %v229 = vld [vmem:[%s228] sm:$0xff]
  %s230 = scalar_lea.vmem %s1, 456
  %231 = vst [vmem:[%s230] sm:$0xff] %v229
  %s232 = scalar_lea.vmem %s0, 216
  %v233 = vld [vmem:[%s232] sm:$0xff]
  %s234 = scalar_lea.vmem %s1, 120
  %235 = vst [vmem:[%s234] sm:$0xff] %v233
  %s236 = scalar_lea.vmem %s0, 664
  %v237 = vld [vmem:[%s236] sm:$0xff]
  %s238 = scalar_lea.vmem %s1, 568
  %239 = vst [vmem:[%s238] sm:$0xff] %v237
  %s240 = scalar_lea.vmem %s0, 328
  %v241 = vld [vmem:[%s240] sm:$0xff]
  %s242 = scalar_lea.vmem %s1, 232
  %243 = vst [vmem:[%s242] sm:$0xff] %v241
  %s244 = scalar_lea.vmem %s0, 776
  %v245 = vld [vmem:[%s244] sm:$0xff]
  %s246 = scalar_lea.vmem %s1, 680
  %247 = vst [vmem:[%s246] sm:$0xff] %v245
  %s248 = scalar_lea.vmem %s0, 440
  %v249 = vld [vmem:[%s248] sm:$0xff]
  %s250 = scalar_lea.vmem %s1, 344
  %251 = vst [vmem:[%s250] sm:$0xff] %v249
  %s252 = scalar_lea.vmem %s0, 888
  %v253 = vld [vmem:[%s252] sm:$0xff]
  %s254 = scalar_lea.vmem %s1, 792
  %255 = vst [vmem:[%s254] sm:$0xff] %v253
  %s256 = scalar_lea.vmem %s0, 88
  %v257 = vld [vmem:[%s256] sm:$0xff]
  %s258 = scalar_lea.vmem %s1, 24
  %259 = vst [vmem:[%s258] sm:$0xff] %v257
  %s260 = scalar_lea.vmem %s0, 536
  %v261 = vld [vmem:[%s260] sm:$0xff]
  %s262 = scalar_lea.vmem %s1, 472
  %263 = vst [vmem:[%s262] sm:$0xff] %v261
  %s264 = scalar_lea.vmem %s0, 200
  %v265 = vld [vmem:[%s264] sm:$0xff]
  %s266 = scalar_lea.vmem %s1, 136
  %267 = vst [vmem:[%s266] sm:$0xff] %v265
  %s268 = scalar_lea.vmem %s0, 648
  %v269 = vld [vmem:[%s268] sm:$0xff]
  %s270 = scalar_lea.vmem %s1, 584
  %271 = vst [vmem:[%s270] sm:$0xff] %v269
  %s272 = scalar_lea.vmem %s0, 312
  %v273 = vld [vmem:[%s272] sm:$0xff]
  %s274 = scalar_lea.vmem %s1, 248
  %275 = vst [vmem:[%s274] sm:$0xff] %v273
  %s276 = scalar_lea.vmem %s0, 760
  %v277 = vld [vmem:[%s276] sm:$0xff]
  %s278 = scalar_lea.vmem %s1, 696
  %279 = vst [vmem:[%s278] sm:$0xff] %v277
  %s280 = scalar_lea.vmem %s0, 424
  %v281 = vld [vmem:[%s280] sm:$0xff]
  %s282 = scalar_lea.vmem %s1, 360
  %283 = vst [vmem:[%s282] sm:$0xff] %v281
  %s284 = scalar_lea.vmem %s0, 872
  %v285 = vld [vmem:[%s284] sm:$0xff]
  %s286 = scalar_lea.vmem %s1, 808
  %287 = vst [vmem:[%s286] sm:$0xff] %v285
  %s288 = scalar_lea.vmem %s0, 72
  %v289 = vld [vmem:[%s288] sm:$0xff]
  %s290 = scalar_lea.vmem %s1, 40
  %291 = vst [vmem:[%s290] sm:$0xff] %v289
  %s292 = scalar_lea.vmem %s0, 520
  %v293 = vld [vmem:[%s292] sm:$0xff]
  %s294 = scalar_lea.vmem %s1, 488
  %295 = vst [vmem:[%s294] sm:$0xff] %v293
  %s296 = scalar_lea.vmem %s0, 184
  %v297 = vld [vmem:[%s296] sm:$0xff]
  %s298 = scalar_lea.vmem %s1, 152
  %299 = vst [vmem:[%s298] sm:$0xff] %v297
  %s300 = scalar_lea.vmem %s0, 632
  %v301 = vld [vmem:[%s300] sm:$0xff]
  %s302 = scalar_lea.vmem %s1, 600
  %303 = vst [vmem:[%s302] sm:$0xff] %v301
  %s304 = scalar_lea.vmem %s0, 296
  %v305 = vld [vmem:[%s304] sm:$0xff]
  %s306 = scalar_lea.vmem %s1, 264
  %307 = vst [vmem:[%s306] sm:$0xff] %v305
  %s308 = scalar_lea.vmem %s0, 744
  %v309 = vld [vmem:[%s308] sm:$0xff]
  %s310 = scalar_lea.vmem %s1, 712
  %311 = vst [vmem:[%s310] sm:$0xff] %v309
  %s312 = scalar_lea.vmem %s0, 408
  %v313 = vld [vmem:[%s312] sm:$0xff]
  %s314 = scalar_lea.vmem %s1, 376
  %315 = vst [vmem:[%s314] sm:$0xff] %v313
  %s316 = scalar_lea.vmem %s0, 856
  %v317 = vld [vmem:[%s316] sm:$0xff]
  %s318 = scalar_lea.vmem %s1, 824
  %319 = vst [vmem:[%s318] sm:$0xff] %v317
  %s320 = scalar_lea.vmem %s0, 56
  %v321 = vld [vmem:[%s320] sm:$0xff]
  %s322 = scalar_lea.vmem %s1, 56
  %323 = vst [vmem:[%s322] sm:$0xff] %v321
  %s324 = scalar_lea.vmem %s0, 504
  %v325 = vld [vmem:[%s324] sm:$0xff]
  %s326 = scalar_lea.vmem %s1, 504
  %327 = vst [vmem:[%s326] sm:$0xff] %v325
  %s328 = scalar_lea.vmem %s0, 168
  %v329 = vld [vmem:[%s328] sm:$0xff]
  %s330 = scalar_lea.vmem %s1, 168
  %331 = vst [vmem:[%s330] sm:$0xff] %v329
  %s332 = scalar_lea.vmem %s0, 616
  %v333 = vld [vmem:[%s332] sm:$0xff]
  %s334 = scalar_lea.vmem %s1, 616
  %335 = vst [vmem:[%s334] sm:$0xff] %v333
  %s336 = scalar_lea.vmem %s0, 280
  %v337 = vld [vmem:[%s336] sm:$0xff]
  %s338 = scalar_lea.vmem %s1, 280
  %339 = vst [vmem:[%s338] sm:$0xff] %v337
  %s340 = scalar_lea.vmem %s0, 728
  %v341 = vld [vmem:[%s340] sm:$0xff]
  %s342 = scalar_lea.vmem %s1, 728
  %343 = vst [vmem:[%s342] sm:$0xff] %v341
  %s344 = scalar_lea.vmem %s0, 392
  %v345 = vld [vmem:[%s344] sm:$0xff]
  %s346 = scalar_lea.vmem %s1, 392
  %347 = vst [vmem:[%s346] sm:$0xff] %v345
  %s348 = scalar_lea.vmem %s0, 840
  %v349 = vld [vmem:[%s348] sm:$0xff]
  %s350 = scalar_lea.vmem %s1, 840
  %351 = vst [vmem:[%s350] sm:$0xff] %v349
  %s352 = scalar_lea.vmem %s0, 40
  %v353 = vld [vmem:[%s352] sm:$0xff]
  %s354 = scalar_lea.vmem %s1, 72
  %355 = vst [vmem:[%s354] sm:$0xff] %v353
  %s356 = scalar_lea.vmem %s0, 488
  %v357 = vld [vmem:[%s356] sm:$0xff]
  %s358 = scalar_lea.vmem %s1, 520
  %359 = vst [vmem:[%s358] sm:$0xff] %v357
  %s360 = scalar_lea.vmem %s0, 152
  %v361 = vld [vmem:[%s360] sm:$0xff]
  %s362 = scalar_lea.vmem %s1, 184
  %363 = vst [vmem:[%s362] sm:$0xff] %v361
  %s364 = scalar_lea.vmem %s0, 600
  %v365 = vld [vmem:[%s364] sm:$0xff]
  %s366 = scalar_lea.vmem %s1, 632
  %367 = vst [vmem:[%s366] sm:$0xff] %v365
  %s368 = scalar_lea.vmem %s0, 264
  %v369 = vld [vmem:[%s368] sm:$0xff]
  %s370 = scalar_lea.vmem %s1, 296
  %371 = vst [vmem:[%s370] sm:$0xff] %v369
  %s372 = scalar_lea.vmem %s0, 712
  %v373 = vld [vmem:[%s372] sm:$0xff]
  %s374 = scalar_lea.vmem %s1, 744
  %375 = vst [vmem:[%s374] sm:$0xff] %v373
  %s376 = scalar_lea.vmem %s0, 376
  %v377 = vld [vmem:[%s376] sm:$0xff]
  %s378 = scalar_lea.vmem %s1, 408
  %379 = vst [vmem:[%s378] sm:$0xff] %v377
  %s380 = scalar_lea.vmem %s0, 824
  %v381 = vld [vmem:[%s380] sm:$0xff]
  %s382 = scalar_lea.vmem %s1, 856
  %383 = vst [vmem:[%s382] sm:$0xff] %v381
  %s384 = scalar_lea.vmem %s0, 24
  %v385 = vld [vmem:[%s384] sm:$0xff]
  %s386 = scalar_lea.vmem %s1, 88
  %387 = vst [vmem:[%s386] sm:$0xff] %v385
  %s388 = scalar_lea.vmem %s0, 472
  %v389 = vld [vmem:[%s388] sm:$0xff]
  %s390 = scalar_lea.vmem %s1, 536
  %391 = vst [vmem:[%s390] sm:$0xff] %v389
  %s392 = scalar_lea.vmem %s0, 136
  %v393 = vld [vmem:[%s392] sm:$0xff]
  %s394 = scalar_lea.vmem %s1, 200
  %395 = vst [vmem:[%s394] sm:$0xff] %v393
  %s396 = scalar_lea.vmem %s0, 584
  %v397 = vld [vmem:[%s396] sm:$0xff]
  %s398 = scalar_lea.vmem %s1, 648
  %399 = vst [vmem:[%s398] sm:$0xff] %v397
  %s400 = scalar_lea.vmem %s0, 248
  %v401 = vld [vmem:[%s400] sm:$0xff]
  %s402 = scalar_lea.vmem %s1, 312
  %403 = vst [vmem:[%s402] sm:$0xff] %v401
  %s404 = scalar_lea.vmem %s0, 696
  %v405 = vld [vmem:[%s404] sm:$0xff]
  %s406 = scalar_lea.vmem %s1, 760
  %407 = vst [vmem:[%s406] sm:$0xff] %v405
  %s408 = scalar_lea.vmem %s0, 360
  %v409 = vld [vmem:[%s408] sm:$0xff]
  %s410 = scalar_lea.vmem %s1, 424
  %411 = vst [vmem:[%s410] sm:$0xff] %v409
  %s412 = scalar_lea.vmem %s0, 808
  %v413 = vld [vmem:[%s412] sm:$0xff]
  %s414 = scalar_lea.vmem %s1, 872
  %415 = vst [vmem:[%s414] sm:$0xff] %v413
  %s416 = scalar_lea.vmem %s0, 8
  %v417 = vld [vmem:[%s416] sm:$0xff]
  %s418 = scalar_lea.vmem %s1, 104
  %419 = vst [vmem:[%s418] sm:$0xff] %v417
  %s420 = scalar_lea.vmem %s0, 456
  %v421 = vld [vmem:[%s420] sm:$0xff]
  %s422 = scalar_lea.vmem %s1, 552
  %423 = vst [vmem:[%s422] sm:$0xff] %v421
  %s424 = scalar_lea.vmem %s0, 120
  %v425 = vld [vmem:[%s424] sm:$0xff]
  %s426 = scalar_lea.vmem %s1, 216
  %427 = vst [vmem:[%s426] sm:$0xff] %v425
  %s428 = scalar_lea.vmem %s0, 568
  %v429 = vld [vmem:[%s428] sm:$0xff]
  %s430 = scalar_lea.vmem %s1, 664
  %431 = vst [vmem:[%s430] sm:$0xff] %v429
  %s432 = scalar_lea.vmem %s0, 232
  %v433 = vld [vmem:[%s432] sm:$0xff]
  %s434 = scalar_lea.vmem %s1, 328
  %435 = vst [vmem:[%s434] sm:$0xff] %v433
  %s436 = scalar_lea.vmem %s0, 680
  %v437 = vld [vmem:[%s436] sm:$0xff]
  %s438 = scalar_lea.vmem %s1, 776
  %439 = vst [vmem:[%s438] sm:$0xff] %v437
  %s440 = scalar_lea.vmem %s0, 344
  %v441 = vld [vmem:[%s440] sm:$0xff]
  %s442 = scalar_lea.vmem %s1, 440
  %443 = vst [vmem:[%s442] sm:$0xff] %v441
  %s444 = scalar_lea.vmem %s0, 792
  %v445 = vld [vmem:[%s444] sm:$0xff]
  %s446 = scalar_lea.vmem %s1, 888
  %447 = vst [vmem:[%s446] sm:$0xff] %v445

</llo_original>
